<compile_context>
chip_gen: v7x
topology: tpu7x:2x2x1
jax: 0.10.0
libtpu: 0.0.40
codegen_flags: <defaults>
</compile_context>

<pallas_src>
import jax
import jax.numpy as jnp
import numpy as np
from jax.experimental import pallas as pl
from jax.experimental.pallas import tpu as pltpu

_SMALL_BYTES = 1 << 20  # below this, pallas_call overhead > copy cost


def identity_pallas(x: jax.Array, *, force_kernel: bool = False) -> jax.Array:
    """Identity forward pass: y = x, executed as a direct HBM->HBM DMA copy."""
    if x.size == 0:
        return x

    nbytes = x.size * x.dtype.itemsize

    # Small-tensor fast path: a true identity; skip the kernel entirely.
    if nbytes < _SMALL_BYTES and not force_kernel:
        return x

    # Split large tensors into equal leading-dim slabs so the grid has >= 2
    # steps and v7x's two TensorCores each issue DMAs.  Only split when it
    # divides evenly and each slab stays >= 2 MiB (per-step overhead ~0.35 us).
    num_chunks = 1
    if x.ndim >= 1 and x.shape[0] > 1 and nbytes >= (4 << 20):
        lead = x.shape[0]
        for cand in (8, 4, 2):
            if lead % cand == 0 and nbytes // cand >= (2 << 20):
                num_chunks = cand
                break
    chunk = (x.shape[0] // num_chunks) if (x.ndim >= 1 and num_chunks > 1) else 0

    def _identity_dma_kernel(x_ref, o_ref, sem):
        if num_chunks == 1:
            # Single DMA of the whole tensor (layout-agnostic, original shape).
            src, dst = x_ref, o_ref
        else:
            i = pl.program_id(0)
            start = pl.multiple_of(i * chunk, chunk)
            src = x_ref.at[pl.ds(start, chunk)]
            dst = o_ref.at[pl.ds(start, chunk)]
        cp = pltpu.make_async_copy(src, dst, sem)
        cp.start()
        cp.wait()

    return pl.pallas_call(
        _identity_dma_kernel,
        out_shape=jax.ShapeDtypeStruct(x.shape, x.dtype),
        grid_spec=pltpu.PrefetchScalarGridSpec(
            num_scalar_prefetch=0,
            grid=(num_chunks,),
            # Raw HBM refs; no auto-DMA, no VMEM staging, no reshape needed.
            in_specs=[pl.BlockSpec(memory_space=pl.ANY)],
            out_specs=pl.BlockSpec(memory_space=pl.ANY),
            scratch_shapes=[pltpu.SemaphoreType.DMA(())],
        ),
        compiler_params=pltpu.CompilerParams(
            # Disjoint slabs per grid step -> shard across v7x TensorCores.
            dimension_semantics=("parallel",),
        ),
        # Pure memory-bound op: read + write of the full tensor, no flops.
        cost_estimate=pl.CostEstimate(
            flops=0, transcendentals=0, bytes_accessed=2 * nbytes
        ),
    )(x)


if __name__ == "__main__":
    key = jax.random.PRNGKey(0)
    # Small NCHW-shaped input consistent with a conv-model pass-through.
    x = jax.random.normal(key, (2, 4, 16, 16), dtype=jnp.float32)

    # Snapshot expected values on the host before running the kernel.
    x_host = np.asarray(jax.device_get(x))

    # Kernel path (force past the small-tensor fast path so the Pallas DMA
    # copy actually runs on this 8 KiB test input).
    y = identity_pallas(x, force_kernel=True)
    jax.block_until_ready(y)
    assert y.shape == (2, 4, 16, 16)
    assert y.dtype == jnp.float32
    assert np.array_equal(np.asarray(jax.device_get(y)), x_host)

    # Default path (small tensor -> pass-through fast path), also exact.
    y_fast = identity_pallas(x)
    jax.block_until_ready(y_fast)
    assert np.array_equal(np.asarray(jax.device_get(y_fast)), x_host)

    print("KERNEL_OK")
</pallas_src>

<mosaic_0001>
module attributes {stable_mosaic.version = 11 : i64} {
  func.func @_identity_dma_kernel(%arg0: i32, %arg1: memref<2x4x16x16xf32, #tpu.memory_space<any>>, %arg2: memref<2x4x16x16xf32, #tpu.memory_space<any>>, %arg3: memref<!tpu.dma_semaphore, #tpu.memory_space<semaphore_mem>>) attributes {dimension_semantics = [#tpu.dimension_semantics<parallel>], iteration_bounds = array<i64: 1>, scalar_prefetch = 0 : i64, scratch_operands = 1 : i64, tpu.core_type = #tpu.core_type<tc>, window_params = [{}, {}]} {
    tpu.enqueue_dma source(%arg1 : memref<2x4x16x16xf32, #tpu.memory_space<any>>) target(%arg2 : memref<2x4x16x16xf32, #tpu.memory_space<any>>) target_semaphore(%arg3 : memref<!tpu.dma_semaphore, #tpu.memory_space<semaphore_mem>>)
    tpu.wait_dma2 semaphore(%arg3 : memref<!tpu.dma_semaphore, #tpu.memory_space<semaphore_mem>>) src(%arg1 : memref<2x4x16x16xf32, #tpu.memory_space<any>>) dst(%arg2 : memref<2x4x16x16xf32, #tpu.memory_space<any>>)
    return
  }
}

</mosaic_0001>

<llo_original>
// kernel: tpu_custom_call.1
$region0: #{tpu_custom_call.1}
  #allocation0 [shape = 'u32[]', space=smem, size = 0x4, offset = 0x4, fixed_abs, tag = 'smem constant byte address 0x4 - core index']
  #allocation1 [shape = 'u32[144,128]{1,0:T(1,128)}', space=vmem, size = 0x12000, scoped, tag = 'internal scratch']
  #allocation2 [shape = 's32[1]{0}', space=sflag, size = 0x4, scoped, tag = 'scratch operand']
  #allocation3 [shape = 's32[]', space=sflag, size = 0x4, offset = 0, fixed_abs, tag = 'sflag constant byte address 0x0 - dummy sync flag']
  #allocation4 [shape = 'u32[0]{0}', space=smem, size = 0, offset = 0, fixed_abs, tag = 'smem constant byte address 0x0 - null']
  %s0 = inlined_call_operand.hbm [shape: f32[2,4,16,16], index: 0, kind: input, shape index: {}]
  %s1 = inlined_call_operand.hbm [shape: f32[2,4,16,16], index: 1, kind: output, shape index: {}]
  %s2 = sld [smem:[#allocation0]]
  $region2: #{tpu_custom_call.1} parent=0
    _
  %s4 = ssub.s32 1, %s2
  %s5 = scalar_select 0, %s4, %s2
  %s7 = sshll.u32 1, 14
  %s8 = sxor.u32 4294967295, %s7
  %s11 = sshll.u32 3, 24
  %s12 = sxor.u32 4294967295, %s11
  %s13 = sand.u32 0, %s12
  %s15 = sor.u32 %s13, 0
  %18 = dma.general %s0, 2048, %s1, [#allocation2], [#allocation3], [#allocation4], %s15, 0
  %s19 = smul.u32 2, 4
  %s20 = smul.u32 %s19, 16
  %s21 = smul.u32 %s20, 1
  %s22 = sshll.u32 %s21, 4
  %23 = dma.done [#allocation2], %s22
  %24 = vsyncmov [#allocation2]
  %s25 = vpop.sfrf %24
  %p26 = scmp.eq.s32.totalorder %s25, 0
  %p27 = pneg %p26
  %29 = shalt.err (%p27)

</llo_original>
